<compile_context>
chip_gen: v6e
topology: v6e:2x2x1
jax: 0.10.0
libtpu: 0.0.40
codegen_flags: <defaults>
</compile_context>

<pallas_src>
import functools

import numpy as np

import jax
import jax.numpy as jnp
from jax.experimental import pallas as pl
from jax.experimental.pallas import tpu as pltpu


def _sep_blur_kernel(wx_ref, wy_ref, x_ref, o_ref, xpad_ref, tmp_ref, *, K, H, W, pad):
    """Separable blur: horizontal K-tap pass then vertical K-tap pass.

    wx_ref, wy_ref : (K,) f32 in SMEM (1-D, scalar reads)
    x_ref          : (B, H, W)   unpadded input block (VMEM)
    o_ref          : (B, H, W)   output block (VMEM)
    xpad_ref       : (B, H+2p, W+2p) VMEM scratch (on-chip zero padding)
    tmp_ref        : (B, H+2p, W)    VMEM scratch (horizontal-pass result)
    """
    # On-chip zero padding: memset then copy the block into the interior.
    xpad_ref[...] = jnp.zeros_like(xpad_ref)
    xpad_ref[:, pad:pad + H, pad:pad + W] = x_ref[...]

    # Hoist scalar weight reads out of the tap loops.
    wx = [wx_ref[k] for k in range(K)]
    wy = [wy_ref[k] for k in range(K)]

    # Horizontal pass (taps along the lane axis).  Gutter rows of xpad are zero,
    # so the corresponding tmp rows come out zero without extra masking.
    tmp_ref[...] = wx[0] * xpad_ref[:, :, 0:W]
    for kj in range(1, K):
        tmp_ref[...] += wx[kj] * xpad_ref[:, :, kj:kj + W]

    # Vertical pass (taps along the sublane axis), accumulate into the output ref.
    o_ref[...] = wy[0] * tmp_ref[:, 0:H, :]
    for ki in range(1, K):
        o_ref[...] += wy[ki] * tmp_ref[:, ki:ki + H, :]


def _full_blur_kernel(w_ref, x_ref, o_ref, xpad_ref, *, K, H, W, pad):
    """Generic (non-separable) K*K cross-correlation fallback.

    w_ref : (K*K,) f32 in SMEM, row-major flattened weights.
    """
    xpad_ref[...] = jnp.zeros_like(xpad_ref)
    xpad_ref[:, pad:pad + H, pad:pad + W] = x_ref[...]

    w = [w_ref[t] for t in range(K * K)]

    o_ref[...] = w[0] * xpad_ref[:, 0:H, 0:W]
    for t in range(1, K * K):
        ki, kj = divmod(t, K)
        o_ref[...] += w[t] * xpad_ref[:, ki:ki + H, kj:kj + W]


def gaussian_conv2d(density_nchw, kernel_weights, *, b_tile=None):
    """density_nchw: (N, 1, H, W); kernel_weights: (K, K).

    Returns the squeezed output, matching `self.kernel(density).squeeze()`.
    """
    N, C, H, W = density_nchw.shape
    assert C == 1, "GaussianKernel is a single-channel conv"
    kw = np.asarray(jax.device_get(kernel_weights), dtype=np.float64)
    K = kw.shape[0]
    assert kw.shape == (K, K)
    assert K % 2 == 1, "odd kernel size expected (padding = K // 2)"
    pad = K // 2
    Hp, Wp = H + 2 * pad, W + 2 * pad

    # Rank-1 (separable) check at setup time; a Gaussian always is.
    u, s, vt = np.linalg.svd(kw)
    separable = (s.size < 2) or (s[1] <= 1e-6 * max(s[0], 1e-30))
    wy = (u[:, 0] * s[0]).astype(np.float32)
    wx = vt[0, :].astype(np.float32)

    # Batch tile: biggest that fits a ~20 MiB per-step VMEM budget (input and
    # output double-buffered + scratches), but keep >= 2 grid steps when N >= 2
    # so v7x's two TensorCores both get work.
    bytes_per_item = 4 * (2 * H * W + 2 * H * W + Hp * Wp + Hp * W)
    budget = 20 << 20
    if b_tile is None:
        b_tile = max(1, min(N, budget // max(bytes_per_item, 1)))
        if N > 1:
            b_tile = min(b_tile, (N + 1) // 2)
    num_tiles = -(-N // b_tile)
    n_pad = num_tiles * b_tile

    # TODO(synk): bf16 input streaming (halves HBM read bytes) once callers
    #             accept ~1e-3 tolerance; f32 kept here for exactness.
    x = density_nchw[:, 0, :, :].astype(jnp.float32)          # (N, H, W)
    if n_pad != N:
        x = jnp.pad(x, ((0, n_pad - N), (0, 0), (0, 0)))      # batch pad only

    if separable:
        kern = functools.partial(_sep_blur_kernel, K=K, H=H, W=W, pad=pad)
        weight_args = (jnp.asarray(wx), jnp.asarray(wy))
        weight_specs = [pl.BlockSpec(memory_space=pltpu.MemorySpace.SMEM)] * 2
        scratch = [pltpu.VMEM((b_tile, Hp, Wp), jnp.float32),
                   pltpu.VMEM((b_tile, Hp, W), jnp.float32)]
    else:
        kern = functools.partial(_full_blur_kernel, K=K, H=H, W=W, pad=pad)
        weight_args = (jnp.asarray(kw.reshape(-1).astype(np.float32)),)
        weight_specs = [pl.BlockSpec(memory_space=pltpu.MemorySpace.SMEM)]
        scratch = [pltpu.VMEM((b_tile, Hp, Wp), jnp.float32)]

    out = pl.pallas_call(
        kern,
        out_shape=jax.ShapeDtypeStruct((n_pad, H, W), jnp.float32),
        grid_spec=pltpu.PrefetchScalarGridSpec(
            num_scalar_prefetch=0,
            grid=(num_tiles,),
            in_specs=weight_specs + [
                pl.BlockSpec((b_tile, H, W), lambda b: (b, 0, 0)),
            ],
            out_specs=pl.BlockSpec((b_tile, H, W), lambda b: (b, 0, 0)),
            scratch_shapes=scratch,
        ),
        compiler_params=pltpu.CompilerParams(
            dimension_semantics=("parallel",),
            vmem_limit_bytes=48 << 20,
        ),
    )(*weight_args, x)

    out = out[:N]
    # Conv2d output is (N, 1, H, W); .squeeze() removes all singleton dims.
    return jnp.squeeze(out.reshape(N, 1, H, W))


def make_gaussian_kernel(K=5, sigma=1.5):
    ax = jnp.arange(K, dtype=jnp.float32) - (K - 1) / 2.0
    xx, yy = jnp.meshgrid(ax, ax)
    g = jnp.exp(-(xx ** 2 + yy ** 2) / (2.0 * sigma ** 2))
    return g / jnp.sum(g)


if __name__ == "__main__":
    key = jax.random.PRNGKey(0)
    N, C, H, W = 2, 1, 16, 16
    density = jax.random.uniform(key, (N, C, H, W), dtype=jnp.float32)

    def ref_conv(x, w):
        r = jax.lax.conv_general_dilated(
            x, w[None, None, :, :], window_strides=(1, 1), padding="SAME",
            dimension_numbers=("NCHW", "OIHW", "NCHW"),
            precision=jax.lax.Precision.HIGHEST)
        return jnp.squeeze(r)

    # Separable (Gaussian) path.
    gw = make_gaussian_kernel(K=5, sigma=1.5)
    out = gaussian_conv2d(density, gw)
    jax.block_until_ready(out)
    ref = ref_conv(density, gw)
    assert out.shape == ref.shape
    assert jnp.allclose(out, ref, atol=1e-5), "separable path mismatch vs reference conv"

    # Generic fallback path (non-separable weights) — same module semantics.
    rw = jax.random.normal(jax.random.PRNGKey(1), (3, 3), dtype=jnp.float32)
    out2 = gaussian_conv2d(density, rw)
    jax.block_until_ready(out2)
    ref2 = ref_conv(density, rw)
    assert out2.shape == ref2.shape
    assert jnp.allclose(out2, ref2, atol=1e-5), "generic path mismatch vs reference conv"

    print("KERNEL_OK")
</pallas_src>

<mosaic_0001>
module attributes {stable_mosaic.version = 11 : i64} {
  func.func @_sep_blur_kernel(%arg0: i32, %arg1: memref<5xf32, #tpu.memory_space<smem>>, %arg2: memref<5xf32, #tpu.memory_space<smem>>, %arg3: memref<1x16x16xf32, #tpu.memory_space<vmem>>, %arg4: memref<1x16x16xf32, #tpu.memory_space<vmem>>, %arg5: memref<1x20x20xf32, #tpu.memory_space<vmem>>, %arg6: memref<1x20x16xf32, #tpu.memory_space<vmem>>) attributes {dimension_semantics = [#tpu.dimension_semantics<parallel>], iteration_bounds = array<i64: 2>, scalar_prefetch = 0 : i64, scratch_operands = 2 : i64, tpu.core_type = #tpu.core_type<tc>, window_params = [{transform_indices = @transform_0, window_bounds = array<i64: 5>}, {transform_indices = @transform_1, window_bounds = array<i64: 5>}, {transform_indices = @transform_2, window_bounds = array<i64: 1, 16, 16>}, {transform_indices = @transform_3, window_bounds = array<i64: 1, 16, 16>}]} {
    %cst = arith.constant 0.000000e+00 : f32
    %0 = vector.broadcast %cst : f32 to vector<1x20x20xf32>
    %c0 = arith.constant 0 : index
    %c0_0 = arith.constant 0 : index
    %c0_1 = arith.constant 0 : index
    %1 = vector.load %arg5[%c0, %c0_0, %c0_1] : memref<1x20x20xf32, #tpu.memory_space<vmem>>, vector<1x20x20xf32>
    tpu.vector_store %arg5[%c0, %c0_0, %c0_1], %0 {strides = array<i32>} : memref<1x20x20xf32, #tpu.memory_space<vmem>>, vector<1x20x20xf32>,
    %c0_2 = arith.constant 0 : index
    %c0_3 = arith.constant 0 : index
    %c0_4 = arith.constant 0 : index
    %2 = vector.load %arg3[%c0_2, %c0_3, %c0_4] : memref<1x16x16xf32, #tpu.memory_space<vmem>>, vector<1x16x16xf32>
    %c0_5 = arith.constant 0 : index
    %c2 = arith.constant 2 : index
    %c2_6 = arith.constant 2 : index
    %3 = vector.load %arg5[%c0_5, %c2, %c2_6] : memref<1x20x20xf32, #tpu.memory_space<vmem>>, vector<1x16x16xf32>
    tpu.vector_store %arg5[%c0_5, %c2, %c2_6], %2 {strides = array<i32>} : memref<1x20x20xf32, #tpu.memory_space<vmem>>, vector<1x16x16xf32>,
    %c0_7 = arith.constant 0 : index
    %4 = memref.load %arg1[%c0_7] : memref<5xf32, #tpu.memory_space<smem>>
    %c1 = arith.constant 1 : index
    %5 = memref.load %arg1[%c1] : memref<5xf32, #tpu.memory_space<smem>>
    %c2_8 = arith.constant 2 : index
    %6 = memref.load %arg1[%c2_8] : memref<5xf32, #tpu.memory_space<smem>>
    %c3 = arith.constant 3 : index
    %7 = memref.load %arg1[%c3] : memref<5xf32, #tpu.memory_space<smem>>
    %c4 = arith.constant 4 : index
    %8 = memref.load %arg1[%c4] : memref<5xf32, #tpu.memory_space<smem>>
    %c0_9 = arith.constant 0 : index
    %9 = memref.load %arg2[%c0_9] : memref<5xf32, #tpu.memory_space<smem>>
    %c1_10 = arith.constant 1 : index
    %10 = memref.load %arg2[%c1_10] : memref<5xf32, #tpu.memory_space<smem>>
    %c2_11 = arith.constant 2 : index
    %11 = memref.load %arg2[%c2_11] : memref<5xf32, #tpu.memory_space<smem>>
    %c3_12 = arith.constant 3 : index
    %12 = memref.load %arg2[%c3_12] : memref<5xf32, #tpu.memory_space<smem>>
    %c4_13 = arith.constant 4 : index
    %13 = memref.load %arg2[%c4_13] : memref<5xf32, #tpu.memory_space<smem>>
    %c0_14 = arith.constant 0 : index
    %c0_15 = arith.constant 0 : index
    %c0_16 = arith.constant 0 : index
    %14 = vector.load %arg5[%c0_14, %c0_15, %c0_16] : memref<1x20x20xf32, #tpu.memory_space<vmem>>, vector<1x20x16xf32>
    %15 = vector.broadcast %4 : f32 to vector<1x20x16xf32>
    %16 = arith.mulf %15, %14 : vector<1x20x16xf32>
    %c0_17 = arith.constant 0 : index
    %c0_18 = arith.constant 0 : index
    %c0_19 = arith.constant 0 : index
    %17 = vector.load %arg6[%c0_17, %c0_18, %c0_19] : memref<1x20x16xf32, #tpu.memory_space<vmem>>, vector<1x20x16xf32>
    tpu.vector_store %arg6[%c0_17, %c0_18, %c0_19], %16 {strides = array<i32>} : memref<1x20x16xf32, #tpu.memory_space<vmem>>, vector<1x20x16xf32>,
    %c0_20 = arith.constant 0 : index
    %c0_21 = arith.constant 0 : index
    %c0_22 = arith.constant 0 : index
    %18 = vector.load %arg6[%c0_20, %c0_21, %c0_22] : memref<1x20x16xf32, #tpu.memory_space<vmem>>, vector<1x20x16xf32>
    %c0_23 = arith.constant 0 : index
    %c0_24 = arith.constant 0 : index
    %c1_25 = arith.constant 1 : index
    %19 = vector.load %arg5[%c0_23, %c0_24, %c1_25] : memref<1x20x20xf32, #tpu.memory_space<vmem>>, vector<1x20x16xf32>
    %20 = vector.broadcast %5 : f32 to vector<1x20x16xf32>
    %21 = arith.mulf %20, %19 : vector<1x20x16xf32>
    %22 = arith.addf %18, %21 : vector<1x20x16xf32>
    %c0_26 = arith.constant 0 : index
    %c0_27 = arith.constant 0 : index
    %c0_28 = arith.constant 0 : index
    %23 = vector.load %arg6[%c0_26, %c0_27, %c0_28] : memref<1x20x16xf32, #tpu.memory_space<vmem>>, vector<1x20x16xf32>
    tpu.vector_store %arg6[%c0_26, %c0_27, %c0_28], %22 {strides = array<i32>} : memref<1x20x16xf32, #tpu.memory_space<vmem>>, vector<1x20x16xf32>,
    %c0_29 = arith.constant 0 : index
    %c0_30 = arith.constant 0 : index
    %c0_31 = arith.constant 0 : index
    %24 = vector.load %arg6[%c0_29, %c0_30, %c0_31] : memref<1x20x16xf32, #tpu.memory_space<vmem>>, vector<1x20x16xf32>
    %c0_32 = arith.constant 0 : index
    %c0_33 = arith.constant 0 : index
    %c2_34 = arith.constant 2 : index
    %25 = vector.load %arg5[%c0_32, %c0_33, %c2_34] : memref<1x20x20xf32, #tpu.memory_space<vmem>>, vector<1x20x16xf32>
    %26 = vector.broadcast %6 : f32 to vector<1x20x16xf32>
    %27 = arith.mulf %26, %25 : vector<1x20x16xf32>
    %28 = arith.addf %24, %27 : vector<1x20x16xf32>
    %c0_35 = arith.constant 0 : index
    %c0_36 = arith.constant 0 : index
    %c0_37 = arith.constant 0 : index
    %29 = vector.load %arg6[%c0_35, %c0_36, %c0_37] : memref<1x20x16xf32, #tpu.memory_space<vmem>>, vector<1x20x16xf32>
    tpu.vector_store %arg6[%c0_35, %c0_36, %c0_37], %28 {strides = array<i32>} : memref<1x20x16xf32, #tpu.memory_space<vmem>>, vector<1x20x16xf32>,
    %c0_38 = arith.constant 0 : index
    %c0_39 = arith.constant 0 : index
    %c0_40 = arith.constant 0 : index
    %30 = vector.load %arg6[%c0_38, %c0_39, %c0_40] : memref<1x20x16xf32, #tpu.memory_space<vmem>>, vector<1x20x16xf32>
    %c0_41 = arith.constant 0 : index
    %c0_42 = arith.constant 0 : index
    %c3_43 = arith.constant 3 : index
    %31 = vector.load %arg5[%c0_41, %c0_42, %c3_43] : memref<1x20x20xf32, #tpu.memory_space<vmem>>, vector<1x20x16xf32>
    %32 = vector.broadcast %7 : f32 to vector<1x20x16xf32>
    %33 = arith.mulf %32, %31 : vector<1x20x16xf32>
    %34 = arith.addf %30, %33 : vector<1x20x16xf32>
    %c0_44 = arith.constant 0 : index
    %c0_45 = arith.constant 0 : index
    %c0_46 = arith.constant 0 : index
    %35 = vector.load %arg6[%c0_44, %c0_45, %c0_46] : memref<1x20x16xf32, #tpu.memory_space<vmem>>, vector<1x20x16xf32>
    tpu.vector_store %arg6[%c0_44, %c0_45, %c0_46], %34 {strides = array<i32>} : memref<1x20x16xf32, #tpu.memory_space<vmem>>, vector<1x20x16xf32>,
    %c0_47 = arith.constant 0 : index
    %c0_48 = arith.constant 0 : index
    %c0_49 = arith.constant 0 : index
    %36 = vector.load %arg6[%c0_47, %c0_48, %c0_49] : memref<1x20x16xf32, #tpu.memory_space<vmem>>, vector<1x20x16xf32>
    %c0_50 = arith.constant 0 : index
    %c0_51 = arith.constant 0 : index
    %c4_52 = arith.constant 4 : index
    %37 = vector.load %arg5[%c0_50, %c0_51, %c4_52] : memref<1x20x20xf32, #tpu.memory_space<vmem>>, vector<1x20x16xf32>
    %38 = vector.broadcast %8 : f32 to vector<1x20x16xf32>
    %39 = arith.mulf %38, %37 : vector<1x20x16xf32>
    %40 = arith.addf %36, %39 : vector<1x20x16xf32>
    %c0_53 = arith.constant 0 : index
    %c0_54 = arith.constant 0 : index
    %c0_55 = arith.constant 0 : index
    %41 = vector.load %arg6[%c0_53, %c0_54, %c0_55] : memref<1x20x16xf32, #tpu.memory_space<vmem>>, vector<1x20x16xf32>
    tpu.vector_store %arg6[%c0_53, %c0_54, %c0_55], %40 {strides = array<i32>} : memref<1x20x16xf32, #tpu.memory_space<vmem>>, vector<1x20x16xf32>,
    %c0_56 = arith.constant 0 : index
    %c0_57 = arith.constant 0 : index
    %c0_58 = arith.constant 0 : index
    %42 = vector.load %arg6[%c0_56, %c0_57, %c0_58] : memref<1x20x16xf32, #tpu.memory_space<vmem>>, vector<1x16x16xf32>
    %43 = vector.broadcast %9 : f32 to vector<1x16x16xf32>
    %44 = arith.mulf %43, %42 : vector<1x16x16xf32>
    %c0_59 = arith.constant 0 : index
    %c0_60 = arith.constant 0 : index
    %c0_61 = arith.constant 0 : index
    %45 = vector.load %arg4[%c0_59, %c0_60, %c0_61] : memref<1x16x16xf32, #tpu.memory_space<vmem>>, vector<1x16x16xf32>
    tpu.vector_store %arg4[%c0_59, %c0_60, %c0_61], %44 {strides = array<i32>} : memref<1x16x16xf32, #tpu.memory_space<vmem>>, vector<1x16x16xf32>,
    %c0_62 = arith.constant 0 : index
    %c0_63 = arith.constant 0 : index
    %c0_64 = arith.constant 0 : index
    %46 = vector.load %arg4[%c0_62, %c0_63, %c0_64] : memref<1x16x16xf32, #tpu.memory_space<vmem>>, vector<1x16x16xf32>
    %c0_65 = arith.constant 0 : index
    %c1_66 = arith.constant 1 : index
    %c0_67 = arith.constant 0 : index
    %47 = vector.load %arg6[%c0_65, %c1_66, %c0_67] : memref<1x20x16xf32, #tpu.memory_space<vmem>>, vector<1x16x16xf32>
    %48 = vector.broadcast %10 : f32 to vector<1x16x16xf32>
    %49 = arith.mulf %48, %47 : vector<1x16x16xf32>
    %50 = arith.addf %46, %49 : vector<1x16x16xf32>
    %c0_68 = arith.constant 0 : index
    %c0_69 = arith.constant 0 : index
    %c0_70 = arith.constant 0 : index
    %51 = vector.load %arg4[%c0_68, %c0_69, %c0_70] : memref<1x16x16xf32, #tpu.memory_space<vmem>>, vector<1x16x16xf32>
    tpu.vector_store %arg4[%c0_68, %c0_69, %c0_70], %50 {strides = array<i32>} : memref<1x16x16xf32, #tpu.memory_space<vmem>>, vector<1x16x16xf32>,
    %c0_71 = arith.constant 0 : index
    %c0_72 = arith.constant 0 : index
    %c0_73 = arith.constant 0 : index
    %52 = vector.load %arg4[%c0_71, %c0_72, %c0_73] : memref<1x16x16xf32, #tpu.memory_space<vmem>>, vector<1x16x16xf32>
    %c0_74 = arith.constant 0 : index
    %c2_75 = arith.constant 2 : index
    %c0_76 = arith.constant 0 : index
    %53 = vector.load %arg6[%c0_74, %c2_75, %c0_76] : memref<1x20x16xf32, #tpu.memory_space<vmem>>, vector<1x16x16xf32>
    %54 = vector.broadcast %11 : f32 to vector<1x16x16xf32>
    %55 = arith.mulf %54, %53 : vector<1x16x16xf32>
    %56 = arith.addf %52, %55 : vector<1x16x16xf32>
    %c0_77 = arith.constant 0 : index
    %c0_78 = arith.constant 0 : index
    %c0_79 = arith.constant 0 : index
    %57 = vector.load %arg4[%c0_77, %c0_78, %c0_79] : memref<1x16x16xf32, #tpu.memory_space<vmem>>, vector<1x16x16xf32>
    tpu.vector_store %arg4[%c0_77, %c0_78, %c0_79], %56 {strides = array<i32>} : memref<1x16x16xf32, #tpu.memory_space<vmem>>, vector<1x16x16xf32>,
    %c0_80 = arith.constant 0 : index
    %c0_81 = arith.constant 0 : index
    %c0_82 = arith.constant 0 : index
    %58 = vector.load %arg4[%c0_80, %c0_81, %c0_82] : memref<1x16x16xf32, #tpu.memory_space<vmem>>, vector<1x16x16xf32>
    %c0_83 = arith.constant 0 : index
    %c3_84 = arith.constant 3 : index
    %c0_85 = arith.constant 0 : index
    %59 = vector.load %arg6[%c0_83, %c3_84, %c0_85] : memref<1x20x16xf32, #tpu.memory_space<vmem>>, vector<1x16x16xf32>
    %60 = vector.broadcast %12 : f32 to vector<1x16x16xf32>
    %61 = arith.mulf %60, %59 : vector<1x16x16xf32>
    %62 = arith.addf %58, %61 : vector<1x16x16xf32>
    %c0_86 = arith.constant 0 : index
    %c0_87 = arith.constant 0 : index
    %c0_88 = arith.constant 0 : index
    %63 = vector.load %arg4[%c0_86, %c0_87, %c0_88] : memref<1x16x16xf32, #tpu.memory_space<vmem>>, vector<1x16x16xf32>
    tpu.vector_store %arg4[%c0_86, %c0_87, %c0_88], %62 {strides = array<i32>} : memref<1x16x16xf32, #tpu.memory_space<vmem>>, vector<1x16x16xf32>,
    %c0_89 = arith.constant 0 : index
    %c0_90 = arith.constant 0 : index
    %c0_91 = arith.constant 0 : index
    %64 = vector.load %arg4[%c0_89, %c0_90, %c0_91] : memref<1x16x16xf32, #tpu.memory_space<vmem>>, vector<1x16x16xf32>
    %c0_92 = arith.constant 0 : index
    %c4_93 = arith.constant 4 : index
    %c0_94 = arith.constant 0 : index
    %65 = vector.load %arg6[%c0_92, %c4_93, %c0_94] : memref<1x20x16xf32, #tpu.memory_space<vmem>>, vector<1x16x16xf32>
    %66 = vector.broadcast %13 : f32 to vector<1x16x16xf32>
    %67 = arith.mulf %66, %65 : vector<1x16x16xf32>
    %68 = arith.addf %64, %67 : vector<1x16x16xf32>
    %c0_95 = arith.constant 0 : index
    %c0_96 = arith.constant 0 : index
    %c0_97 = arith.constant 0 : index
    %69 = vector.load %arg4[%c0_95, %c0_96, %c0_97] : memref<1x16x16xf32, #tpu.memory_space<vmem>>, vector<1x16x16xf32>
    tpu.vector_store %arg4[%c0_95, %c0_96, %c0_97], %68 {strides = array<i32>} : memref<1x16x16xf32, #tpu.memory_space<vmem>>, vector<1x16x16xf32>,
    return
  }
  func.func @transform_0(%arg0: i32) -> i32 {
    %c0_i32 = arith.constant 0 : i32
    %c0_i32_0 = arith.constant 0 : i32
    return %c0_i32 : i32
  }
  func.func @transform_1(%arg0: i32) -> i32 {
    %c0_i32 = arith.constant 0 : i32
    %c0_i32_0 = arith.constant 0 : i32
    return %c0_i32 : i32
  }
  func.func @transform_2(%arg0: i32) -> (i32, i32, i32) {
    %c0_i32 = arith.constant 0 : i32
    %c0_i32_0 = arith.constant 0 : i32
    %c0_i32_1 = arith.constant 0 : i32
    return %arg0, %c0_i32, %c0_i32_0 : i32, i32, i32
  }
  func.func @transform_3(%arg0: i32) -> (i32, i32, i32) {
    %c0_i32 = arith.constant 0 : i32
    %c0_i32_0 = arith.constant 0 : i32
    %c0_i32_1 = arith.constant 0 : i32
    return %arg0, %c0_i32, %c0_i32_0 : i32, i32, i32
  }
}

</mosaic_0001>

<llo_original>
// kernel: tpu_custom_call.1
$region0: #{tpu_custom_call.1}
  #allocation0 [shape = 'u32[]', space=smem, size = 0x4, offset = 0x4, fixed_abs, tag = 'smem constant byte address 0x4 - core index']
  #allocation1 [shape = 'u32[144,128]{1,0:T(1,128)}', space=vmem, size = 0x12000, scoped, tag = 'internal scratch']
  #allocation2 [shape = 'f32[1,20,20]{2,1,0:T(8,128)}', space=vmem, size = 0x3000, scoped, tag = 'scratch operand']
  #allocation3 [shape = 'f32[1,20,16]{2,1,0:T(8,128)}', space=vmem, size = 0x3000, scoped, tag = 'scratch operand']
  %s0 = inlined_call_operand.hbm [shape: f32[5], index: 0, kind: input, shape index: {}]
  %s1 = inlined_call_operand.vmem [shape: f32[5], index: 1, kind: input, shape index: {}]
  %s2 = inlined_call_operand.hbm [shape: f32[2,16,16], index: 2, kind: input, shape index: {}]
  %s3 = inlined_call_operand.hbm [shape: f32[2,16,16], index: 3, kind: output, shape index: {}]
  %s4 = sld [smem:[#allocation0]]
  $region57: #{tpu_custom_call.1} parent=0
    _
  %s6 = ssub.s32 1, %s4
  %s7 = scalar_select 0, %s6, %s4
  $region1: #{tpu_custom_call.1} parent=0
    #allocation4 [shape = 'u8[512]{0}', space=smem, size = 0x200, scoped, tag = 'input window, operand 0, single buffered']
    #allocation5 [shape = 's32[2]{0}', space=sflag, size = 0x8, scoped, tag = 'scoped memory for tpu_custom_call.1']
    #allocation6 [shape = 's32[2]{0}', space=sflag, size = 0x8, scoped, tag = 'scoped memory for tpu_custom_call.1']
    #allocation7 [shape = 's32[2]{0}', space=sflag, size = 0x8, scoped, tag = 'scoped memory for tpu_custom_call.1']
    #allocation8 [shape = 's32[2]{0}', space=sflag, size = 0x8, scoped, tag = 'scoped memory for tpu_custom_call.1']
    #allocation9 [shape = 'u8[512]{0}', space=smem, size = 0x200, scoped, tag = 'input window, operand 1, single buffered']
    #allocation10 [shape = 'u8[16384]{0}', space=vmem, size = 0x4000, scoped, tag = 'input window, operand 2']
    #allocation11 [shape = 'u8[16384]{0}', space=vmem, size = 0x4000, scoped, tag = 'output window, operand 0']
    %8 = vsyncpa [#allocation7], 0
    %9 = vsyncpa [#allocation8], 0
    %10 = vsyncpa [#allocation5], 0
    %s11 = scalar_lea.sflag [#allocation5], 1
    %12 = vsyncpa %s11, 0
    %13 = vsyncpa [#allocation6], 0
    %s14 = scalar_lea.sflag [#allocation6], 1
    %15 = vsyncpa %s14, 0
    loop: start=0, step=1, limit=4
    $region2: #{tpu_custom_call.1} parent=1 // loop_pre_header
      _
    $region3: #{tpu_custom_call.1} parent=1 // loop_header
      %s17 = sphi 0, %s21
      %p18 = scmp.ge.s32.totalorder %s17, 4
      %s25 = sphi 0, %s25
      %s27 = sphi 0, %s25
      %s28 = sphi 0, %s27
      %s42 = sphi 0, %s28
      %s46 = sphi 0, %s46
      %s48 = sphi 0, %s46
      %s49 = sphi 0, %s48
      %s63 = sphi 0, %s49
      %s69 = sphi 0, %s71
      %s72 = sphi 0, %s69
      %s73 = sphi 0, %s72
      %s89 = sphi 0, %s73
      %s95 = sphi 0, %s97
      %s98 = sphi 0, %s95
      %s99 = sphi 0, %s98
      %s115 = sphi 0, %s99
    $region4: #{tpu_custom_call.1} parent=1 // loop_header_branch
      %20 = sbr.rel (%p18) target = $region8
    $region5: #{tpu_custom_call.1} parent=1 // loop_body
      %s22 = ssub.s32 %s17, 1
      %s23 = ssub.s32 %s17, 2
      %s24 = sadd.s32 %s17, 1
      %s26 = sadd.s32 %s25, 1
      %p29 = scmp.eq.s32.totalorder %s17, 1
      %p30 = scmp.ne.s32.totalorder %s25, %s27
      %p31 = scmp.eq.s32.totalorder %s17, 0
      %p32 = por %p30, %p31
      %p33 = scmp.ne.s32.totalorder %s25, %s27
      %p34 = scmp.eq.s32.totalorder %s22, 1
      %p35 = por %p33, %p34
      %p36 = scmp.ne.s32.totalorder %s27, %s28
      %p37 = scmp.eq.s32.totalorder %s22, 0
      %p38 = por %p36, %p37
      %p39 = scmp.ne.s32.totalorder %s27, %s28
      %p40 = scmp.eq.s32.totalorder %s23, 1
      %p41 = por %p39, %p40
      %p43 = scmp.ne.s32.totalorder %s28, %s42
      %p44 = scmp.eq.s32.totalorder %s23, 0
      %p45 = por %p43, %p44
      %s47 = sadd.s32 %s46, 1
      %p50 = scmp.eq.s32.totalorder %s17, 1
      %p51 = scmp.ne.s32.totalorder %s46, %s48
      %p52 = scmp.eq.s32.totalorder %s17, 0
      %p53 = por %p51, %p52
      %p54 = scmp.ne.s32.totalorder %s46, %s48
      %p55 = scmp.eq.s32.totalorder %s22, 1
      %p56 = por %p54, %p55
      %p57 = scmp.ne.s32.totalorder %s48, %s49
      %p58 = scmp.eq.s32.totalorder %s22, 0
      %p59 = por %p57, %p58
      %p60 = scmp.ne.s32.totalorder %s48, %s49
      %p61 = scmp.eq.s32.totalorder %s23, 1
      %p62 = por %p60, %p61
      %p64 = scmp.ne.s32.totalorder %s49, %s63
      %p65 = scmp.eq.s32.totalorder %s23, 0
      %p66 = por %p64, %p65
      %s67 = ssub.s32 %s17, %s24
      %p68 = scmp.eq.s32.totalorder %s67, 0
      %s70 = sadd.s32 %s69, 1
      %s71 = scalar_select %p68, %s69, %s70
      %p74 = pneg %p68
      %p75 = scmp.eq.s32.totalorder %s17, 1
      %p76 = por %p74, %p75
      %p77 = scmp.ne.s32.totalorder %s69, %s72
      %p78 = scmp.eq.s32.totalorder %s17, 0
      %p79 = por %p77, %p78
      %p80 = scmp.ne.s32.totalorder %s69, %s72
      %p81 = scmp.eq.s32.totalorder %s22, 1
      %p82 = por %p80, %p81
      %p83 = scmp.ne.s32.totalorder %s72, %s73
      %p84 = scmp.eq.s32.totalorder %s22, 0
      %p85 = por %p83, %p84
      %p86 = scmp.ne.s32.totalorder %s72, %s73
      %p87 = scmp.eq.s32.totalorder %s23, 1
      %p88 = por %p86, %p87
      %p90 = scmp.ne.s32.totalorder %s73, %s89
      %p91 = scmp.eq.s32.totalorder %s23, 0
      %p92 = por %p90, %p91
      %s93 = ssub.s32 %s17, %s24
      %p94 = scmp.eq.s32.totalorder %s93, 0
      %s96 = sadd.s32 %s95, 1
      %s97 = scalar_select %p94, %s95, %s96
      %p100 = pneg %p94
      %p101 = scmp.eq.s32.totalorder %s17, 1
      %p102 = por %p100, %p101
      %p103 = scmp.ne.s32.totalorder %s95, %s98
      %p104 = scmp.eq.s32.totalorder %s17, 0
      %p105 = por %p103, %p104
      %p106 = scmp.ne.s32.totalorder %s95, %s98
      %p107 = scmp.eq.s32.totalorder %s22, 1
      %p108 = por %p106, %p107
      %p109 = scmp.ne.s32.totalorder %s98, %s99
      %p110 = scmp.eq.s32.totalorder %s22, 0
      %p111 = por %p109, %p110
      %p112 = scmp.ne.s32.totalorder %s98, %s99
      %p113 = scmp.eq.s32.totalorder %s23, 1
      %p114 = por %p112, %p113
      %p116 = scmp.ne.s32.totalorder %s99, %s115
      %p117 = scmp.eq.s32.totalorder %s23, 0
      %p118 = por %p116, %p117
      %p119 = scmp.le.s32.totalorder 1, %s17
      %p120 = scmp.lt.s32.totalorder %s17, 3
      %p121 = pnand %p119, %p120
      %p122 = pneg %p121
      // Predicated region
      $region9: #{tpu_custom_call.1} parent=5 // pred_check
        _
      $region10: #{tpu_custom_call.1} parent=5 // pred_check_branch
        %124 = sbr.rel (%p121) target = $region12
      $region11: #{tpu_custom_call.1} parent=5 // pred_region
        %s125 = ssub.s32 %s17, 1
        // Predicated region
        $region13: #{tpu_custom_call.1} parent=11 // pred_check
          %p126 = pneg %p38
        $region14: #{tpu_custom_call.1} parent=11 // pred_check_branch
          %128 = sbr.rel (%p126) target = $region16
        $region15: #{tpu_custom_call.1} parent=11 // pred_region
          %s130 = ssub.s32 16, 16
          %131 = vsyncadd [#allocation7], %s130
          %134 = dma.hbm_to_smem %s0, 16, [#allocation4], [#allocation7]
        $region16: #{tpu_custom_call.1} parent=11 // pred_fallthru
          _
        // Predicated region
        $region17: #{tpu_custom_call.1} parent=11 // pred_check
          %p135 = pneg %p59
        $region18: #{tpu_custom_call.1} parent=11 // pred_check_branch
          %137 = sbr.rel (%p135) target = $region20
        $region19: #{tpu_custom_call.1} parent=11 // pred_region
          %s139 = ssub.s32 16, 16
          %140 = vsyncadd [#allocation8], %s139
          %s142 = sshll.u32 %s1, 4
          %s143 = int_to_ptr.vmem [resolvable:$true] %s142
          %145 = dma.vmem_to_smem %s143, 16, [#allocation9], [#allocation8]
        $region20: #{tpu_custom_call.1} parent=11 // pred_fallthru
          _
      $region12: #{tpu_custom_call.1} parent=5 // pred_fallthru
        _
      %p146 = scmp.lt.s32.totalorder %s17, 2
      // Predicated region
      $region21: #{tpu_custom_call.1} parent=5 // pred_check
        %p147 = pneg %p146
      $region22: #{tpu_custom_call.1} parent=5 // pred_check_branch
        %149 = sbr.rel (%p147) target = $region24
      $region23: #{tpu_custom_call.1} parent=5 // pred_region
        // Predicated region
        $region25: #{tpu_custom_call.1} parent=23 // pred_check
          %p150 = pneg %p79
        $region26: #{tpu_custom_call.1} parent=23 // pred_check_branch
          %152 = sbr.rel (%p150) target = $region28
        $region27: #{tpu_custom_call.1} parent=23 // pred_region
          %s153 = sand.u32 %s69, 1
          %s154 = scalar_lea.sflag [#allocation5], %s153
          %s155 = sand.u32 %s69, 1
          %s156 = smul.addr %s155, 16
          %s157 = scalar_lea.vmem [#allocation10], %s156
          %s159 = ssub.s32 256, 256
          %160 = vsyncadd %s154, %s159
          %s161 = smul.addr %s17, 2
          %s162 = smul.addr %s161, 128
          %s163 = scalar_lea.hbm %s2, %s162
          %s164 = sshll.u32 %s157, 4
          %s165 = int_to_ptr.vmem [resolvable:$true] %s164
          %170 = dma.hbm_to_vmem [thread:$0]  %s163, 256, %s165, %s154, 128, 128, 8
        $region28: #{tpu_custom_call.1} parent=23 // pred_fallthru
          _
      $region24: #{tpu_custom_call.1} parent=5 // pred_fallthru
        _
      %p171 = scmp.le.s32.totalorder 1, %s17
      %p172 = scmp.lt.s32.totalorder %s17, 3
      %p173 = pnand %p171, %p172
      %p174 = pneg %p173
      // Predicated region
      $region29: #{tpu_custom_call.1} parent=5 // pred_check
        _
      $region30: #{tpu_custom_call.1} parent=5 // pred_check_branch
        %176 = sbr.rel (%p173) target = $region32
      $region31: #{tpu_custom_call.1} parent=5 // pred_region
        %s177 = ssub.s32 %s17, 1
        // Predicated region
        $region33: #{tpu_custom_call.1} parent=31 // pred_check
          %p178 = pneg %p38
        $region34: #{tpu_custom_call.1} parent=31 // pred_check_branch
          %180 = sbr.rel (%p178) target = $region36
        $region35: #{tpu_custom_call.1} parent=31 // pred_region
          %181 = dma.done [#allocation7], 16
        $region36: #{tpu_custom_call.1} parent=31 // pred_fallthru
          _
        // Predicated region
        $region37: #{tpu_custom_call.1} parent=31 // pred_check
          %p182 = pneg %p59
        $region38: #{tpu_custom_call.1} parent=31 // pred_check_branch
          %184 = sbr.rel (%p182) target = $region40
        $region39: #{tpu_custom_call.1} parent=31 // pred_region
          %185 = dma.done [#allocation8], 16
        $region40: #{tpu_custom_call.1} parent=31 // pred_fallthru
          _
        %s186 = sand.u32 %s72, 1
        %s187 = scalar_lea.sflag [#allocation5], %s186
        %s188 = sand.u32 %s72, 1
        %s189 = smul.addr %s188, 16
        %s190 = scalar_lea.vmem [#allocation10], %s189
        // Predicated region
        $region41: #{tpu_custom_call.1} parent=31 // pred_check
          %p191 = pneg %p85
        $region42: #{tpu_custom_call.1} parent=31 // pred_check_branch
          %193 = sbr.rel (%p191) target = $region44
        $region43: #{tpu_custom_call.1} parent=31 // pred_region
          %194 = dma.done %s187, 256
        $region44: #{tpu_custom_call.1} parent=31 // pred_fallthru
          _
        %195 = sfence
        %p196 = pneg %p38
        %p197 = pneg %p35
        %p198 = pneg %p59
        %p199 = pneg %p56
        %s200 = sand.u32 %s72, 1
        %s201 = scalar_lea.sflag [#allocation5], %s200
        %s202 = sand.u32 %s72, 1
        %s203 = smul.addr %s202, 16
        %s204 = scalar_lea.vmem [#allocation10], %s203
        %p205 = pneg %p85
        %p206 = pneg %p82
        %p207 = pneg %p111
        %p208 = pneg %p108
        %s209 = sand.u32 %s98, 1
        %s210 = scalar_lea.sflag [#allocation6], %s209
        %s211 = sand.u32 %s98, 1
        %s212 = smul.addr %s211, 16
        %s213 = scalar_lea.vmem [#allocation11], %s212
        %vm214 = vcmask 162816
        %215 = vst.msk [vmem:[#allocation2] sm:$0xff] %vm214, 0.0
        %216 = vst.msk [vmem:[#allocation2 + $0x8] sm:$0xff] %vm214, 0.0
        %vm217 = vcmask 158720
        %218 = vst.msk [vmem:[#allocation2 + $0x10] sm:$0xf] %vm217, 0.0
        %v219 = vld [vmem:[%s190] sm:$0xff]
        %v220 = vld [vmem:[%s190 + $0x8] sm:$0xff]
        %223 = vrot.lane.b32.xlu0 %v219, 2
        %v224 = vpop.permute.xlu0 %223
        %225 = vrot.lane.b32.xlu0 %v220, 2
        %v226 = vpop.permute.xlu0 %225
        %vm229 = vcmask 146448
        %230 = vst.msk [vmem:[#allocation2 + $0x2] sm:$0xff] %vm229, %v224
        %231 = vst.msk [vmem:[#allocation2 + $0xa] sm:$0xff] %vm229, %v226
        %s232 = sld [smem:[#allocation4]]
        %s233 = sld [smem:[#allocation4 + $0x1]]
        %s234 = sld [smem:[#allocation4 + $0x2]]
        %s235 = sld [smem:[#allocation4 + $0x3]]
        %s236 = sld [smem:[#allocation4 + $0x4]]
        %s237 = sld [smem:[#allocation9]]
        %s238 = sld [smem:[#allocation9 + $0x1]]
        %s239 = sld [smem:[#allocation9 + $0x2]]
        %s240 = sld [smem:[#allocation9 + $0x3]]
        %s241 = sld [smem:[#allocation9 + $0x4]]
        %v242 = vld [vmem:[#allocation2] sm:$0xff]
        %v243 = vld [vmem:[#allocation2 + $0x8] sm:$0xff]
        %v244 = vld [vmem:[#allocation2 + $0x10] sm:$0xf]
        %v245 = vstv %s232
        %v246 = vmul.f32 %v245, %v242
        %v247 = vmul.f32 %v245, %v243
        %v248 = vmul.f32 %v245, %v244
        %vm249 = vcmask 130048
        %250 = vst.msk [vmem:[#allocation3] sm:$0xff] %vm249, %v246
        %251 = vst.msk [vmem:[#allocation3 + $0x8] sm:$0xff] %vm249, %v247
        %vm252 = vcmask 125952
        %253 = vst.msk [vmem:[#allocation3 + $0x10] sm:$0xf] %vm252, %v248
        %v254 = vld [vmem:[#allocation3] sm:$0xff]
        %v255 = vld [vmem:[#allocation3 + $0x8] sm:$0xff]
        %v256 = vld [vmem:[#allocation3 + $0x10] sm:$0xf]
        %v257 = vld [vmem:[#allocation2] sm:$0xff]
        %v258 = vld [vmem:[#allocation2 + $0x8] sm:$0xff]
        %v259 = vld [vmem:[#allocation2 + $0x10] sm:$0xf]
        %v260 = vstv %s233
        %v261 = vmul.f32 %v260, %v257
        %v262 = vmul.f32 %v260, %v258
        %v263 = vmul.f32 %v260, %v259
        %267 = vrot.lane.b32.xlu0 %v261, 127
        %v268 = vpop.permute.xlu0 %267
        %269 = vrot.lane.b32.xlu0 %v262, 127
        %v270 = vpop.permute.xlu0 %269
        %271 = vrot.lane.b32.xlu0 %v263, 127
        %v272 = vpop.permute.xlu0 %271
        %v276 = vadd.f32 %v254, %v268
        %v277 = vadd.f32 %v255, %v270
        %v278 = vadd.f32 %v256, %v272
        %279 = vst.msk [vmem:[#allocation3] sm:$0xff] %vm249, %v276
        %280 = vst.msk [vmem:[#allocation3 + $0x8] sm:$0xff] %vm249, %v277
        %281 = vst.msk [vmem:[#allocation3 + $0x10] sm:$0xf] %vm252, %v278
        %v282 = vld [vmem:[#allocation3] sm:$0xff]
        %v283 = vld [vmem:[#allocation3 + $0x8] sm:$0xff]
        %v284 = vld [vmem:[#allocation3 + $0x10] sm:$0xf]
        %v285 = vld [vmem:[#allocation2] sm:$0xff]
        %v286 = vld [vmem:[#allocation2 + $0x8] sm:$0xff]
        %v287 = vld [vmem:[#allocation2 + $0x10] sm:$0xf]
        %v288 = vstv %s234
        %v289 = vmul.f32 %v288, %v285
        %v290 = vmul.f32 %v288, %v286
        %v291 = vmul.f32 %v288, %v287
        %295 = vrot.lane.b32.xlu0 %v289, 126
        %v296 = vpop.permute.xlu0 %295
        %297 = vrot.lane.b32.xlu0 %v290, 126
        %v298 = vpop.permute.xlu0 %297
        %299 = vrot.lane.b32.xlu0 %v291, 126
        %v300 = vpop.permute.xlu0 %299
        %v304 = vadd.f32 %v282, %v296
        %v305 = vadd.f32 %v283, %v298
        %v306 = vadd.f32 %v284, %v300
        %307 = vst.msk [vmem:[#allocation3] sm:$0xff] %vm249, %v304
        %308 = vst.msk [vmem:[#allocation3 + $0x8] sm:$0xff] %vm249, %v305
        %309 = vst.msk [vmem:[#allocation3 + $0x10] sm:$0xf] %vm252, %v306
        %v310 = vld [vmem:[#allocation3] sm:$0xff]
        %v311 = vld [vmem:[#allocation3 + $0x8] sm:$0xff]
        %v312 = vld [vmem:[#allocation3 + $0x10] sm:$0xf]
        %v313 = vld [vmem:[#allocation2] sm:$0xff]
        %v314 = vld [vmem:[#allocation2 + $0x8] sm:$0xff]
        %v315 = vld [vmem:[#allocation2 + $0x10] sm:$0xf]
        %v316 = vstv %s235
        %v317 = vmul.f32 %v316, %v313
        %v318 = vmul.f32 %v316, %v314
        %v319 = vmul.f32 %v316, %v315
        %323 = vrot.lane.b32.xlu0 %v317, 125
        %v324 = vpop.permute.xlu0 %323
        %325 = vrot.lane.b32.xlu0 %v318, 125
        %v326 = vpop.permute.xlu0 %325
        %327 = vrot.lane.b32.xlu0 %v319, 125
        %v328 = vpop.permute.xlu0 %327
        %v332 = vadd.f32 %v310, %v324
        %v333 = vadd.f32 %v311, %v326
        %v334 = vadd.f32 %v312, %v328
        %335 = vst.msk [vmem:[#allocation3] sm:$0xff] %vm249, %v332
        %336 = vst.msk [vmem:[#allocation3 + $0x8] sm:$0xff] %vm249, %v333
        %337 = vst.msk [vmem:[#allocation3 + $0x10] sm:$0xf] %vm252, %v334
        %v338 = vld [vmem:[#allocation3] sm:$0xff]
        %v339 = vld [vmem:[#allocation3 + $0x8] sm:$0xff]
        %v340 = vld [vmem:[#allocation3 + $0x10] sm:$0xf]
        %v341 = vld [vmem:[#allocation2] sm:$0xff]
        %v342 = vld [vmem:[#allocation2 + $0x8] sm:$0xff]
        %v343 = vld [vmem:[#allocation2 + $0x10] sm:$0xf]
        %v344 = vstv %s236
        %v345 = vmul.f32 %v344, %v341
        %v346 = vmul.f32 %v344, %v342
        %v347 = vmul.f32 %v344, %v343
        %351 = vrot.lane.b32.xlu0 %v345, 124
        %v352 = vpop.permute.xlu0 %351
        %353 = vrot.lane.b32.xlu0 %v346, 124
        %v354 = vpop.permute.xlu0 %353
        %355 = vrot.lane.b32.xlu0 %v347, 124
        %v356 = vpop.permute.xlu0 %355
        %v360 = vadd.f32 %v338, %v352
        %v361 = vadd.f32 %v339, %v354
        %v362 = vadd.f32 %v340, %v356
        %363 = vst.msk [vmem:[#allocation3] sm:$0xff] %vm249, %v360
        %364 = vst.msk [vmem:[#allocation3 + $0x8] sm:$0xff] %vm249, %v361
        %365 = vst.msk [vmem:[#allocation3 + $0x10] sm:$0xf] %vm252, %v362
        %v366 = vld [vmem:[#allocation3] sm:$0xff]
        %v367 = vld [vmem:[#allocation3 + $0x8] sm:$0xff]
        %v368 = vstv %s237
        %v369 = vmul.f32 %v368, %v366
        %v370 = vmul.f32 %v368, %v367
        %371 = vst.msk [vmem:[%s213] sm:$0xff] %vm249, %v369
        %372 = vst.msk [vmem:[%s213 + $0x8] sm:$0xff] %vm249, %v370
        %v373 = vld [vmem:[%s213] sm:$0xff]
        %v374 = vld [vmem:[%s213 + $0x8] sm:$0xff]
        %v375 = vld [vmem:[#allocation3 + $0x1] sm:$0xff]
        %v376 = vld [vmem:[#allocation3 + $0x9] sm:$0xff]
        %v377 = vstv %s238
        %v378 = vmul.f32 %v377, %v375
        %v379 = vmul.f32 %v377, %v376
        %v380 = vadd.f32 %v373, %v378
        %v381 = vadd.f32 %v374, %v379
        %382 = vst.msk [vmem:[%s213] sm:$0xff] %vm249, %v380
        %383 = vst.msk [vmem:[%s213 + $0x8] sm:$0xff] %vm249, %v381
        %v384 = vld [vmem:[%s213] sm:$0xff]
        %v385 = vld [vmem:[%s213 + $0x8] sm:$0xff]
        %v386 = vld [vmem:[#allocation3 + $0x2] sm:$0xff]
        %v387 = vld [vmem:[#allocation3 + $0xa] sm:$0xff]
        %v388 = vstv %s239
        %v389 = vmul.f32 %v388, %v386
        %v390 = vmul.f32 %v388, %v387
        %v391 = vadd.f32 %v384, %v389
        %v392 = vadd.f32 %v385, %v390
        %393 = vst.msk [vmem:[%s213] sm:$0xff] %vm249, %v391
        %394 = vst.msk [vmem:[%s213 + $0x8] sm:$0xff] %vm249, %v392
        %v395 = vld [vmem:[%s213] sm:$0xff]
        %v396 = vld [vmem:[%s213 + $0x8] sm:$0xff]
        %v397 = vld [vmem:[#allocation3 + $0x3] sm:$0xff]
        %v398 = vld [vmem:[#allocation3 + $0xb] sm:$0xff]
        %v399 = vstv %s240
        %v400 = vmul.f32 %v399, %v397
        %v401 = vmul.f32 %v399, %v398
        %v402 = vadd.f32 %v395, %v400
        %v403 = vadd.f32 %v396, %v401
        %404 = vst.msk [vmem:[%s213] sm:$0xff] %vm249, %v402
        %405 = vst.msk [vmem:[%s213 + $0x8] sm:$0xff] %vm249, %v403
        %v406 = vld [vmem:[%s213] sm:$0xff]
        %v407 = vld [vmem:[%s213 + $0x8] sm:$0xff]
        %v408 = vld [vmem:[#allocation3 + $0x4] sm:$0xff]
        %v409 = vld [vmem:[#allocation3 + $0xc] sm:$0xff]
        %v410 = vstv %s241
        %v411 = vmul.f32 %v410, %v408
        %v412 = vmul.f32 %v410, %v409
        %v413 = vadd.f32 %v406, %v411
        %v414 = vadd.f32 %v407, %v412
        %415 = vst.msk [vmem:[%s213] sm:$0xff] %vm249, %v413
        %416 = vst.msk [vmem:[%s213 + $0x8] sm:$0xff] %vm249, %v414
        %s417 = sand.u32 %s98, 1
        %s418 = scalar_lea.sflag [#allocation6], %s417
        %s419 = sand.u32 %s98, 1
        %s420 = smul.addr %s419, 16
        %s421 = scalar_lea.vmem [#allocation11], %s420
        // Predicated region
        $region45: #{tpu_custom_call.1} parent=31 // pred_check
          %p422 = pneg %p108
        $region46: #{tpu_custom_call.1} parent=31 // pred_check_branch
          %424 = sbr.rel (%p422) target = $region48
        $region47: #{tpu_custom_call.1} parent=31 // pred_region
          %s426 = ssub.s32 256, 256
          %427 = vsyncadd %s418, %s426
          %s428 = smul.addr %s22, 2
          %s429 = smul.addr %s428, 128
          %s430 = scalar_lea.hbm %s3, %s429
          %s431 = sshll.u32 %s421, 4
          %s432 = int_to_ptr.vmem [resolvable:$true] %s431
          %437 = dma.vmem_to_hbm [thread:$0]  %s432, 256, %s430, %s418, 128, 128, 8
        $region48: #{tpu_custom_call.1} parent=31 // pred_fallthru
          _
      $region32: #{tpu_custom_call.1} parent=5 // pred_fallthru
        _
      %p438 = scmp.le.s32.totalorder 2, %s17
      // Predicated region
      $region49: #{tpu_custom_call.1} parent=5 // pred_check
        %p439 = pneg %p438
      $region50: #{tpu_custom_call.1} parent=5 // pred_check_branch
        %441 = sbr.rel (%p439) target = $region52
      $region51: #{tpu_custom_call.1} parent=5 // pred_region
        %s442 = ssub.s32 %s17, 2
        // Predicated region
        $region53: #{tpu_custom_call.1} parent=51 // pred_check
          %p443 = pneg %p114
        $region54: #{tpu_custom_call.1} parent=51 // pred_check_branch
          %445 = sbr.rel (%p443) target = $region56
        $region55: #{tpu_custom_call.1} parent=51 // pred_region
          %s446 = sand.u32 %s99, 1
          %s447 = scalar_lea.sflag [#allocation6], %s446
          %s448 = sand.u32 %s99, 1
          %s449 = smul.addr %s448, 16
          %s450 = scalar_lea.vmem [#allocation11], %s449
          %451 = dma.done %s447, 256
        $region56: #{tpu_custom_call.1} parent=51 // pred_fallthru
          _
      $region52: #{tpu_custom_call.1} parent=5 // pred_fallthru
        _
    $region6: #{tpu_custom_call.1} parent=1 // loop_footer
      %s21 = sadd.s32 1, %s17
    $region7: #{tpu_custom_call.1} parent=1 // loop_footer_branch
      %16 = sbr.rel target = $region3
    $region8: #{tpu_custom_call.1} parent=1 // loop_exit
      _
    %452 = vsyncpa [#allocation5], 1
    %s453 = scalar_lea.sflag [#allocation5], 1
    %454 = vsyncpa %s453, 1
    %455 = vsyncpa [#allocation6], 1
    %s456 = scalar_lea.sflag [#allocation6], 1
    %457 = vsyncpa %s456, 1
    %458 = vsyncpa [#allocation7], 1
    %s459 = scalar_lea.sflag [#allocation7], 1
    %460 = vsyncpa %s459, 1
    %461 = vsyncpa [#allocation8], 1
    %s462 = scalar_lea.sflag [#allocation8], 1
    %463 = vsyncpa %s462, 1

</llo_original>
